<compile_context>
chip_gen: v5e
topology: v5e:2x2
jax: 0.10.0
libtpu: 0.0.40
codegen_flags: <defaults>
</compile_context>

<pallas_src>
import numpy as np
import jax
import jax.numpy as jnp
from jax.experimental import pallas as pl
from jax.experimental.pallas import tpu as pltpu

N_QUBITS = 4
N_STATES = 1 << N_QUBITS   # 16
LANE = 128
TILE_B_MAX = 4096          # lane-aligned batch-tile cap; per-tile VMEM well under 20 MiB


def _round_up(x, m):
    return ((x + m - 1) // m) * m


def _cdiv(a, b):
    return (a + b - 1) // b


def _tiling(batch):
    """Lane-aligned batch tiling: minimal padding; >=2 tiles whenever possible
    so dimension_semantics=("parallel",) actually shards across v7x's two TCs."""
    bp = _round_up(max(batch, 1), LANE)
    groups = bp // LANE
    want_tiles = max(_cdiv(bp, TILE_B_MAX), 2 if groups >= 2 else 1)
    tile_groups = _cdiv(groups, want_tiles)
    tile_b = tile_groups * LANE
    num_tiles = _cdiv(groups, tile_groups)
    return tile_b, num_tiles, tile_b * num_tiles


def _vmem_limit_bytes(tile_b, d, mm_bytes):
    est = (2 * d * tile_b * mm_bytes                 # x tile, double-buffered
           + 256 * tile_b * (4 + mm_bytes)           # h1 (f32) + matmul-dtype copy
           + 10 * N_STATES * tile_b * 4              # angles/cos/sin/pairs/st/psi/probs
           + (64 + 32) * tile_b * (4 + mm_bytes)     # h2, h3
           + 2 * tile_b * 4                          # output row, double-buffered
           + 2 * 4 * (256 * d + 8 * 256 + 3 * 16 * 16 + 64 * 16 + 32 * 64 + 512))
    # 2x headroom for compiler scratch/spills; stay above v5e's 16 MiB default
    # scoped limit and below v7x's 64 MiB physical VMEM.
    return int(min(56 * 2 ** 20, max(32 * 2 ** 20, 2 * est)))


# ----------------------------------------------------------------------------
# Pallas kernel: whole HybridNet forward for one batch tile (batch on lanes)
# ----------------------------------------------------------------------------
def hybrid_kernel(x_ref, w1_ref, b1_ref, w2_ref, b2_ref,
                  pairbits_ref, e01_ref, e23_ref, m_ref,
                  w3_ref, b3_ref, w4_ref, b4_ref, w5_ref, b5_ref, o_ref):
    f32 = jnp.float32
    mm = w1_ref.dtype  # matmul operand dtype (bf16 or f32); accumulation is always f32

    # classical_pre: h1 = relu(W1^T x + b1); Dropout(0.2) is identity in eval mode.
    h1 = jnp.dot(w1_ref[...], x_ref[...], preferred_element_type=f32) + b1_ref[...]
    h1 = jnp.maximum(h1, 0.0).astype(mm)                                       # [256, TB]

    # Linear(256,4); the RY half-angle factor 0.5 is already folded into w2/b2.
    half = jnp.dot(w2_ref[...], h1, preferred_element_type=f32) + b2_ref[...]  # [4, TB] f32
    c = jnp.cos(half)
    s = jnp.sin(half)

    # RY(inputs) product state (qubit 0 = MSB), built from two qubit-pair blocks:
    #   p01[a] = (c0|s0 by bit0(a)) * (c1|s1 by bit1(a)),   p23 analogous for qubits 2,3
    hi = pairbits_ref[:, 0:1]                                                  # [4,1] const 0/1
    lo = pairbits_ref[:, 1:2]                                                  # [4,1] const 0/1
    p01 = (c[0:1] + (s[0:1] - c[0:1]) * hi) * (c[1:2] + (s[1:2] - c[1:2]) * lo)  # [4, TB]
    p23 = (c[2:3] + (s[2:3] - c[2:3]) * hi) * (c[3:4] + (s[3:4] - c[3:4]) * lo)  # [4, TB]
    # Expand pairs to the 16 basis states with constant 0/1 selection matmuls:
    #   st[j] = p01[j >> 2] * p23[j & 3]
    st = (jnp.dot(e01_ref[...], p01, preferred_element_type=f32) *
          jnp.dot(e23_ref[...], p23, preferred_element_type=f32))              # [16, TB] f32

    # Fixed circuit part (2 x [CNOT chain ; RY(weights)]) as one 16x16 matmul,
    # then PauliZ expvals folded into W3:  h2 = relu((zs W3)^T |psi|^2 + b3)
    psi = jnp.dot(m_ref[...], st.astype(mm), preferred_element_type=f32)       # [16, TB] f32
    probs = psi * psi                                                          # f32
    h2 = jnp.maximum(jnp.dot(w3_ref[...], probs.astype(mm), preferred_element_type=f32)
                     + b3_ref[...], 0.0).astype(mm)                            # [64, TB]
    h3 = jnp.maximum(jnp.dot(w4_ref[...], h2, preferred_element_type=f32)
                     + b4_ref[...], 0.0).astype(mm)                            # [32, TB]

    # Final Linear(32,1) produces a lane-dense [1, TB] output row (no masked stores).
    o_ref[...] = jnp.dot(w5_ref[...], h3, preferred_element_type=f32) + b5_ref[...]


# ----------------------------------------------------------------------------
# Host-side constants: fixed 16x16 circuit unitary, Z-sign matrix, bit masks
# ----------------------------------------------------------------------------
def _ry(theta):
    c, s = np.cos(theta / 2.0), np.sin(theta / 2.0)
    return np.array([[c, -s], [s, c]], dtype=np.float64)


def _kron_list(mats):
    out = mats[0]
    for m in mats[1:]:
        out = np.kron(out, m)
    return out


def build_fixed_unitary(qweights):
    """16x16 real unitary for: for layer in 2: CNOT(0,1),CNOT(1,2),CNOT(2,3); then RY(w[layer][i]).
    Exactly the spec's gate order (CNOT chain BEFORE the RYs, no 3->0 wrap). Qubit 0 = MSB."""
    I2 = np.eye(2)
    CNOT = np.array([[1, 0, 0, 0],
                     [0, 1, 0, 0],
                     [0, 0, 0, 1],
                     [0, 0, 1, 0]], dtype=np.float64)

    def cnot_full(i):  # control i, target i+1 (adjacent wires)
        return _kron_list([I2] * i + [CNOT] + [I2] * (N_QUBITS - i - 2))

    M = np.eye(N_STATES)
    for layer in range(2):
        for i in range(N_QUBITS - 1):
            M = cnot_full(i) @ M
        ry_all = _kron_list([_ry(qweights[layer, k]) for k in range(N_QUBITS)])
        M = ry_all @ M
    return M.astype(np.float32)


def build_zsign():
    """zs[j, i] = <j| Z_i |j> = +1/-1 from bit i of basis state j (qubit 0 = MSB)."""
    zs = np.zeros((N_STATES, N_QUBITS), dtype=np.float32)
    for j in range(N_STATES):
        for i in range(N_QUBITS):
            zs[j, i] = 1.0 - 2.0 * ((j >> (N_QUBITS - 1 - i)) & 1)
    return zs


def build_bits():
    """bits[j, i] = bit i (qubit 0 = MSB) of basis state j, as float 0/1 (reference only)."""
    bits = np.zeros((N_STATES, N_QUBITS), dtype=np.float32)
    for j in range(N_STATES):
        for i in range(N_QUBITS):
            bits[j, i] = (j >> (N_QUBITS - 1 - i)) & 1
    return bits


# ----------------------------------------------------------------------------
# Wrapper
# ----------------------------------------------------------------------------
def make_hybridnet(input_dim, key, *, use_bf16_matmul=True):
    ks = jax.random.split(key, 11)
    f32 = jnp.float32

    def lin(kw, kb, fan_in, fan_out):
        bound = 1.0 / np.sqrt(fan_in)
        w = jax.random.uniform(kw, (fan_in, fan_out), f32, -bound, bound)
        b = jax.random.uniform(kb, (fan_out,), f32, -bound, bound)
        return w, b

    w1, b1 = lin(ks[0], ks[1], input_dim, 256)
    w2, b2 = lin(ks[2], ks[3], 256, N_QUBITS)
    w3, b3 = lin(ks[4], ks[5], N_QUBITS, 64)
    w4, b4 = lin(ks[6], ks[7], 64, 32)
    w5, b5 = lin(ks[8], ks[9], 32, 1)

    # TorchLayer default init: uniform(0, 2*pi) for the (2, n_qubits) circuit weights.
    qweights = np.asarray(
        jax.random.uniform(ks[10], (2, N_QUBITS), f32, 0.0, 2.0 * np.pi), dtype=np.float64)
    m_np = build_fixed_unitary(qweights)                       # [16, 16]
    zs_np = build_zsign()                                      # [16, 4]

    mm_dtype = jnp.bfloat16 if use_bf16_matmul else f32        # matmul operand dtype
    mm_bytes = jnp.dtype(mm_dtype).itemsize

    # Batch-on-lanes layout: every Linear stored as W^T ([out, in]); biases as [out, 1] (f32).
    w1t = jnp.asarray(w1.T, mm_dtype)                          # [256, D]
    b1c = b1.reshape(256, 1)
    w2ht = jnp.asarray(0.5 * w2.T, mm_dtype)                   # [4, 256] (RY half-angle folded)
    b2hc = (0.5 * b2).reshape(N_QUBITS, 1)
    m_fixed = jnp.asarray(m_np, mm_dtype)                      # [16, 16] fixed circuit unitary
    w3qt = jnp.asarray((zs_np @ np.asarray(w3)).T, mm_dtype)   # [64, 16] (Z-signs folded into W3)
    b3c = b3.reshape(64, 1)
    w4t = jnp.asarray(w4.T, mm_dtype)                          # [32, 64]
    b4c = b4.reshape(32, 1)
    w5t = jnp.asarray(w5.T, mm_dtype)                          # [1, 32]
    b5c = b5.reshape(1, 1)

    # Constant selection/pair-bit matrices for the product-state build (kept f32).
    pairbits = jnp.asarray([[0., 0.], [0., 1.], [1., 0.], [1., 1.]], f32)       # [4, 2]
    e01 = jnp.asarray(np.eye(4, dtype=np.float32)[np.arange(N_STATES) >> 2])    # [16, 4]
    e23 = jnp.asarray(np.eye(4, dtype=np.float32)[np.arange(N_STATES) & 3])     # [16, 4]

    params = (w1t, b1c, w2ht, b2hc, pairbits, e01, e23, m_fixed,
              w3qt, b3c, w4t, b4c, w5t, b5c)

    def _impl(x, params):
        (w1t, b1c, w2ht, b2hc, pairbits, e01, e23, m_fixed,
         w3qt, b3c, w4t, b4c, w5t, b5c) = params
        b, d = x.shape
        tile_b, num_tiles, bp = _tiling(b)

        # One fused layout op under jit: cast -> transpose -> pad (batch onto lanes).
        xt = x.astype(mm_dtype).T                              # [D, B]
        if bp != b:
            xt = jnp.pad(xt, ((0, 0), (0, bp - b)))

        def resident(p):                                       # stays in VMEM, DMA'd once
            return pl.BlockSpec(tuple(p.shape), lambda i: (0, 0))

        in_specs = [pl.BlockSpec((d, tile_b), lambda i: (0, i))] + [resident(p) for p in params]
        out_spec = pl.BlockSpec((1, tile_b), lambda i: (0, i))  # lane-dense output row

        weight_bytes = sum(int(p.size) * p.dtype.itemsize for p in params)
        cost = pl.CostEstimate(
            flops=2 * bp * (d * 256 + 256 * N_QUBITS + 2 * 4 * N_STATES
                            + N_STATES * N_STATES + N_STATES * 64 + 64 * 32 + 32),
            transcendentals=2 * bp * N_QUBITS,
            bytes_accessed=int(xt.size) * mm_bytes + weight_bytes + bp * 4,
        )

        out = pl.pallas_call(
            hybrid_kernel,
            grid=(num_tiles,),
            out_shape=jax.ShapeDtypeStruct((1, bp), jnp.float32),
            in_specs=in_specs,
            out_specs=out_spec,
            compiler_params=pltpu.CompilerParams(
                dimension_semantics=("parallel",),             # megacore sharding on v7x
                vmem_limit_bytes=_vmem_limit_bytes(tile_b, d, mm_bytes)),
            cost_estimate=cost,
        )(xt, *params)

        return out.reshape(bp, 1)[:b]

    impl = jax.jit(_impl)

    def forward(x):
        assert x.ndim == 2 and x.shape[1] == input_dim
        return impl(x, params)

    # Pure-JAX reference (row layout, no folding) for correctness checking.
    bits_np = build_bits()

    def reference(x):
        h = jnp.maximum(x @ w1 + b1, 0.0)
        ang = h @ w2 + b2
        c = jnp.cos(0.5 * ang)
        s = jnp.sin(0.5 * ang)
        st = jnp.ones((x.shape[0], N_STATES), jnp.float32)
        for i in range(N_QUBITS):
            bi = jnp.asarray(bits_np[:, i])[None, :]           # [1, 16]
            st = st * (c[:, i:i + 1] * (1.0 - bi) + s[:, i:i + 1] * bi)
        psi = st @ jnp.asarray(m_np).T
        z = (psi * psi) @ jnp.asarray(zs_np)
        h2 = jnp.maximum(z @ w3 + b3, 0.0)
        h3 = jnp.maximum(h2 @ w4 + b4, 0.0)
        return h3 @ w5 + b5

    return forward, reference


if __name__ == "__main__":
    B, INPUT_DIM = 8, 32
    key = jax.random.PRNGKey(0)
    k_x, k_p = jax.random.split(key)
    x = jax.random.normal(k_x, (B, INPUT_DIM), jnp.float32)

    # f32-operand path: should be numerically very close to the pure-JAX reference.
    forward_f32, reference = make_hybridnet(INPUT_DIM, k_p, use_bf16_matmul=False)
    out_f32 = forward_f32(x)
    jax.block_until_ready(out_f32)
    assert out_f32.shape == (B, 1) and out_f32.dtype == jnp.float32
    ref = np.asarray(reference(x))
    np.testing.assert_allclose(np.asarray(out_f32), ref, rtol=1e-4, atol=1e-4)

    # bf16-operand path (default, fastest on v5e/v6e/v7x MXUs): looser tolerance.
    forward_bf16, _ = make_hybridnet(INPUT_DIM, k_p, use_bf16_matmul=True)
    out_bf16 = forward_bf16(x)
    jax.block_until_ready(out_bf16)
    assert out_bf16.shape == (B, 1) and out_bf16.dtype == jnp.float32
    np.testing.assert_allclose(np.asarray(out_bf16), ref, rtol=5e-2, atol=5e-2)

    # Padded / multi-tile batch path (exercises the batch grid and padding logic).
    B2 = 260
    x2 = jax.random.normal(jax.random.PRNGKey(1), (B2, INPUT_DIM), jnp.float32)
    out2 = forward_bf16(x2)
    jax.block_until_ready(out2)
    assert out2.shape == (B2, 1)
    np.testing.assert_allclose(np.asarray(out2), np.asarray(reference(x2)),
                               rtol=5e-2, atol=5e-2)

    print("KERNEL_OK")
</pallas_src>

<mosaic_0001>
module attributes {stable_mosaic.version = 11 : i64} {
  func.func @hybrid_kernel(%arg0: i32, %arg1: memref<32x128xf32, #tpu.memory_space<vmem>>, %arg2: memref<256x32xf32, #tpu.memory_space<vmem>>, %arg3: memref<256x1xf32, #tpu.memory_space<vmem>>, %arg4: memref<4x256xf32, #tpu.memory_space<vmem>>, %arg5: memref<4x1xf32, #tpu.memory_space<vmem>>, %arg6: memref<4x2xf32, #tpu.memory_space<vmem>>, %arg7: memref<16x4xf32, #tpu.memory_space<vmem>>, %arg8: memref<16x4xf32, #tpu.memory_space<vmem>>, %arg9: memref<16x16xf32, #tpu.memory_space<vmem>>, %arg10: memref<64x16xf32, #tpu.memory_space<vmem>>, %arg11: memref<64x1xf32, #tpu.memory_space<vmem>>, %arg12: memref<32x64xf32, #tpu.memory_space<vmem>>, %arg13: memref<32x1xf32, #tpu.memory_space<vmem>>, %arg14: memref<1x32xf32, #tpu.memory_space<vmem>>, %arg15: memref<1x1xf32, #tpu.memory_space<vmem>>, %arg16: memref<1x128xf32, #tpu.memory_space<vmem>>) attributes {dimension_semantics = [#tpu.dimension_semantics<parallel>], iteration_bounds = array<i64: 1>, scalar_prefetch = 0 : i64, scratch_operands = 0 : i64, tpu.core_type = #tpu.core_type<tc>, window_params = [{transform_indices = @transform_0, window_bounds = array<i64: 32, 128>}, {pipeline_mode = #tpu.pipeline_mode<synchronous>, transform_indices = @transform_1, window_bounds = array<i64: 256, 32>}, {pipeline_mode = #tpu.pipeline_mode<synchronous>, transform_indices = @transform_2, window_bounds = array<i64: 256, 1>}, {pipeline_mode = #tpu.pipeline_mode<synchronous>, transform_indices = @transform_3, window_bounds = array<i64: 4, 256>}, {pipeline_mode = #tpu.pipeline_mode<synchronous>, transform_indices = @transform_4, window_bounds = array<i64: 4, 1>}, {pipeline_mode = #tpu.pipeline_mode<synchronous>, transform_indices = @transform_5, window_bounds = array<i64: 4, 2>}, {pipeline_mode = #tpu.pipeline_mode<synchronous>, transform_indices = @transform_6, window_bounds = array<i64: 16, 4>}, {pipeline_mode = #tpu.pipeline_mode<synchronous>, transform_indices = @transform_7, window_bounds = array<i64: 16, 4>}, {pipeline_mode = #tpu.pipeline_mode<synchronous>, transform_indices = @transform_8, window_bounds = array<i64: 16, 16>}, {pipeline_mode = #tpu.pipeline_mode<synchronous>, transform_indices = @transform_9, window_bounds = array<i64: 64, 16>}, {pipeline_mode = #tpu.pipeline_mode<synchronous>, transform_indices = @transform_10, window_bounds = array<i64: 64, 1>}, {pipeline_mode = #tpu.pipeline_mode<synchronous>, transform_indices = @transform_11, window_bounds = array<i64: 32, 64>}, {pipeline_mode = #tpu.pipeline_mode<synchronous>, transform_indices = @transform_12, window_bounds = array<i64: 32, 1>}, {pipeline_mode = #tpu.pipeline_mode<synchronous>, transform_indices = @transform_13, window_bounds = array<i64: 1, 32>}, {pipeline_mode = #tpu.pipeline_mode<synchronous>, transform_indices = @transform_14, window_bounds = array<i64: 1, 1>}, {transform_indices = @transform_15, window_bounds = array<i64: 1, 128>}]} {
    %c0 = arith.constant 0 : index
    %c0_0 = arith.constant 0 : index
    %0 = vector.load %arg2[%c0, %c0_0] : memref<256x32xf32, #tpu.memory_space<vmem>>, vector<256x32xf32>
    %c0_1 = arith.constant 0 : index
    %c0_2 = arith.constant 0 : index
    %1 = vector.load %arg1[%c0_1, %c0_2] : memref<32x128xf32, #tpu.memory_space<vmem>>, vector<32x128xf32>
    %cst = arith.constant dense<0.000000e+00> : vector<256x128xf32>
    %2 = tpu.matmul %0, %1, %cst {dimension_numbers = #tpu.dot_dimension_numbers<[1], [0], [0], [1], [0, 0, 1, 1], [], []>} : vector<256x32xf32>, vector<32x128xf32>, vector<256x128xf32> -> vector<256x128xf32>
    %c0_3 = arith.constant 0 : index
    %c0_4 = arith.constant 0 : index
    %3 = vector.load %arg3[%c0_3, %c0_4] : memref<256x1xf32, #tpu.memory_space<vmem>>, vector<256x1xf32>
    %4 = vector.broadcast %3 : vector<256x1xf32> to vector<256x128xf32>
    %5 = arith.addf %2, %4 : vector<256x128xf32>
    %cst_5 = arith.constant 0.000000e+00 : f32
    %6 = vector.broadcast %cst_5 : f32 to vector<256x128xf32>
    %7 = arith.maximumf %5, %6 : vector<256x128xf32>
    %c0_6 = arith.constant 0 : index
    %c0_7 = arith.constant 0 : index
    %8 = vector.load %arg4[%c0_6, %c0_7] : memref<4x256xf32, #tpu.memory_space<vmem>>, vector<4x256xf32>
    %cst_8 = arith.constant dense<0.000000e+00> : vector<4x128xf32>
    %9 = tpu.matmul %8, %7, %cst_8 {dimension_numbers = #tpu.dot_dimension_numbers<[1], [0], [0], [1], [0, 0, 1, 1], [], []>} : vector<4x256xf32>, vector<256x128xf32>, vector<4x128xf32> -> vector<4x128xf32>
    %c0_9 = arith.constant 0 : index
    %c0_10 = arith.constant 0 : index
    %10 = vector.load %arg5[%c0_9, %c0_10] : memref<4x1xf32, #tpu.memory_space<vmem>>, vector<4x1xf32>
    %11 = vector.broadcast %10 : vector<4x1xf32> to vector<4x128xf32>
    %12 = arith.addf %9, %11 : vector<4x128xf32>
    %13 = math.cos %12 : vector<4x128xf32>
    %14 = math.sin %12 : vector<4x128xf32>
    %c0_11 = arith.constant 0 : index
    %c0_12 = arith.constant 0 : index
    %15 = vector.load %arg6[%c0_11, %c0_12] : memref<4x2xf32, #tpu.memory_space<vmem>>, vector<4x1xf32>
    %c0_13 = arith.constant 0 : index
    %c1 = arith.constant 1 : index
    %16 = vector.load %arg6[%c0_13, %c1] : memref<4x2xf32, #tpu.memory_space<vmem>>, vector<4x1xf32>
    %17 = vector.extract_strided_slice %13 {offsets = [0, 0], sizes = [1, 128], strides = [1, 1]} : vector<4x128xf32> to vector<1x128xf32>
    %18 = vector.extract_strided_slice %14 {offsets = [0, 0], sizes = [1, 128], strides = [1, 1]} : vector<4x128xf32> to vector<1x128xf32>
    %19 = vector.extract_strided_slice %13 {offsets = [0, 0], sizes = [1, 128], strides = [1, 1]} : vector<4x128xf32> to vector<1x128xf32>
    %20 = arith.subf %18, %19 : vector<1x128xf32>
    %21 = vector.broadcast %20 : vector<1x128xf32> to vector<4x128xf32>
    %22 = vector.broadcast %15 : vector<4x1xf32> to vector<4x128xf32>
    %23 = arith.mulf %21, %22 : vector<4x128xf32>
    %24 = vector.broadcast %17 : vector<1x128xf32> to vector<4x128xf32>
    %25 = arith.addf %24, %23 : vector<4x128xf32>
    %26 = vector.extract_strided_slice %13 {offsets = [1, 0], sizes = [1, 128], strides = [1, 1]} : vector<4x128xf32> to vector<1x128xf32>
    %27 = vector.extract_strided_slice %14 {offsets = [1, 0], sizes = [1, 128], strides = [1, 1]} : vector<4x128xf32> to vector<1x128xf32>
    %28 = vector.extract_strided_slice %13 {offsets = [1, 0], sizes = [1, 128], strides = [1, 1]} : vector<4x128xf32> to vector<1x128xf32>
    %29 = arith.subf %27, %28 : vector<1x128xf32>
    %30 = vector.broadcast %29 : vector<1x128xf32> to vector<4x128xf32>
    %31 = vector.broadcast %16 : vector<4x1xf32> to vector<4x128xf32>
    %32 = arith.mulf %30, %31 : vector<4x128xf32>
    %33 = vector.broadcast %26 : vector<1x128xf32> to vector<4x128xf32>
    %34 = arith.addf %33, %32 : vector<4x128xf32>
    %35 = arith.mulf %25, %34 : vector<4x128xf32>
    %36 = vector.extract_strided_slice %13 {offsets = [2, 0], sizes = [1, 128], strides = [1, 1]} : vector<4x128xf32> to vector<1x128xf32>
    %37 = vector.extract_strided_slice %14 {offsets = [2, 0], sizes = [1, 128], strides = [1, 1]} : vector<4x128xf32> to vector<1x128xf32>
    %38 = vector.extract_strided_slice %13 {offsets = [2, 0], sizes = [1, 128], strides = [1, 1]} : vector<4x128xf32> to vector<1x128xf32>
    %39 = arith.subf %37, %38 : vector<1x128xf32>
    %40 = vector.broadcast %39 : vector<1x128xf32> to vector<4x128xf32>
    %41 = vector.broadcast %15 : vector<4x1xf32> to vector<4x128xf32>
    %42 = arith.mulf %40, %41 : vector<4x128xf32>
    %43 = vector.broadcast %36 : vector<1x128xf32> to vector<4x128xf32>
    %44 = arith.addf %43, %42 : vector<4x128xf32>
    %45 = vector.extract_strided_slice %13 {offsets = [3, 0], sizes = [1, 128], strides = [1, 1]} : vector<4x128xf32> to vector<1x128xf32>
    %46 = vector.extract_strided_slice %14 {offsets = [3, 0], sizes = [1, 128], strides = [1, 1]} : vector<4x128xf32> to vector<1x128xf32>
    %47 = vector.extract_strided_slice %13 {offsets = [3, 0], sizes = [1, 128], strides = [1, 1]} : vector<4x128xf32> to vector<1x128xf32>
    %48 = arith.subf %46, %47 : vector<1x128xf32>
    %49 = vector.broadcast %48 : vector<1x128xf32> to vector<4x128xf32>
    %50 = vector.broadcast %16 : vector<4x1xf32> to vector<4x128xf32>
    %51 = arith.mulf %49, %50 : vector<4x128xf32>
    %52 = vector.broadcast %45 : vector<1x128xf32> to vector<4x128xf32>
    %53 = arith.addf %52, %51 : vector<4x128xf32>
    %54 = arith.mulf %44, %53 : vector<4x128xf32>
    %c0_14 = arith.constant 0 : index
    %c0_15 = arith.constant 0 : index
    %55 = vector.load %arg7[%c0_14, %c0_15] : memref<16x4xf32, #tpu.memory_space<vmem>>, vector<16x4xf32>
    %cst_16 = arith.constant dense<0.000000e+00> : vector<16x128xf32>
    %56 = tpu.matmul %55, %35, %cst_16 {dimension_numbers = #tpu.dot_dimension_numbers<[1], [0], [0], [1], [0, 0, 1, 1], [], []>} : vector<16x4xf32>, vector<4x128xf32>, vector<16x128xf32> -> vector<16x128xf32>
    %c0_17 = arith.constant 0 : index
    %c0_18 = arith.constant 0 : index
    %57 = vector.load %arg8[%c0_17, %c0_18] : memref<16x4xf32, #tpu.memory_space<vmem>>, vector<16x4xf32>
    %cst_19 = arith.constant dense<0.000000e+00> : vector<16x128xf32>
    %58 = tpu.matmul %57, %54, %cst_19 {dimension_numbers = #tpu.dot_dimension_numbers<[1], [0], [0], [1], [0, 0, 1, 1], [], []>} : vector<16x4xf32>, vector<4x128xf32>, vector<16x128xf32> -> vector<16x128xf32>
    %59 = arith.mulf %56, %58 : vector<16x128xf32>
    %c0_20 = arith.constant 0 : index
    %c0_21 = arith.constant 0 : index
    %60 = vector.load %arg9[%c0_20, %c0_21] : memref<16x16xf32, #tpu.memory_space<vmem>>, vector<16x16xf32>
    %cst_22 = arith.constant dense<0.000000e+00> : vector<16x128xf32>
    %61 = tpu.matmul %60, %59, %cst_22 {dimension_numbers = #tpu.dot_dimension_numbers<[1], [0], [0], [1], [0, 0, 1, 1], [], []>} : vector<16x16xf32>, vector<16x128xf32>, vector<16x128xf32> -> vector<16x128xf32>
    %62 = arith.mulf %61, %61 : vector<16x128xf32>
    %c0_23 = arith.constant 0 : index
    %c0_24 = arith.constant 0 : index
    %63 = vector.load %arg10[%c0_23, %c0_24] : memref<64x16xf32, #tpu.memory_space<vmem>>, vector<64x16xf32>
    %cst_25 = arith.constant dense<0.000000e+00> : vector<64x128xf32>
    %64 = tpu.matmul %63, %62, %cst_25 {dimension_numbers = #tpu.dot_dimension_numbers<[1], [0], [0], [1], [0, 0, 1, 1], [], []>} : vector<64x16xf32>, vector<16x128xf32>, vector<64x128xf32> -> vector<64x128xf32>
    %c0_26 = arith.constant 0 : index
    %c0_27 = arith.constant 0 : index
    %65 = vector.load %arg11[%c0_26, %c0_27] : memref<64x1xf32, #tpu.memory_space<vmem>>, vector<64x1xf32>
    %66 = vector.broadcast %65 : vector<64x1xf32> to vector<64x128xf32>
    %67 = arith.addf %64, %66 : vector<64x128xf32>
    %cst_28 = arith.constant 0.000000e+00 : f32
    %68 = vector.broadcast %cst_28 : f32 to vector<64x128xf32>
    %69 = arith.maximumf %67, %68 : vector<64x128xf32>
    %c0_29 = arith.constant 0 : index
    %c0_30 = arith.constant 0 : index
    %70 = vector.load %arg12[%c0_29, %c0_30] : memref<32x64xf32, #tpu.memory_space<vmem>>, vector<32x64xf32>
    %cst_31 = arith.constant dense<0.000000e+00> : vector<32x128xf32>
    %71 = tpu.matmul %70, %69, %cst_31 {dimension_numbers = #tpu.dot_dimension_numbers<[1], [0], [0], [1], [0, 0, 1, 1], [], []>} : vector<32x64xf32>, vector<64x128xf32>, vector<32x128xf32> -> vector<32x128xf32>
    %c0_32 = arith.constant 0 : index
    %c0_33 = arith.constant 0 : index
    %72 = vector.load %arg13[%c0_32, %c0_33] : memref<32x1xf32, #tpu.memory_space<vmem>>, vector<32x1xf32>
    %73 = vector.broadcast %72 : vector<32x1xf32> to vector<32x128xf32>
    %74 = arith.addf %71, %73 : vector<32x128xf32>
    %cst_34 = arith.constant 0.000000e+00 : f32
    %75 = vector.broadcast %cst_34 : f32 to vector<32x128xf32>
    %76 = arith.maximumf %74, %75 : vector<32x128xf32>
    %c0_35 = arith.constant 0 : index
    %c0_36 = arith.constant 0 : index
    %77 = vector.load %arg14[%c0_35, %c0_36] : memref<1x32xf32, #tpu.memory_space<vmem>>, vector<1x32xf32>
    %cst_37 = arith.constant dense<0.000000e+00> : vector<1x128xf32>
    %78 = tpu.matmul %77, %76, %cst_37 {dimension_numbers = #tpu.dot_dimension_numbers<[1], [0], [0], [1], [0, 0, 1, 1], [], []>} : vector<1x32xf32>, vector<32x128xf32>, vector<1x128xf32> -> vector<1x128xf32>
    %c0_38 = arith.constant 0 : index
    %c0_39 = arith.constant 0 : index
    %79 = vector.load %arg15[%c0_38, %c0_39] : memref<1x1xf32, #tpu.memory_space<vmem>>, vector<1x1xf32>
    %80 = vector.broadcast %79 : vector<1x1xf32> to vector<1x128xf32>
    %81 = arith.addf %78, %80 : vector<1x128xf32>
    %c0_40 = arith.constant 0 : index
    %c0_41 = arith.constant 0 : index
    %82 = vector.load %arg16[%c0_40, %c0_41] : memref<1x128xf32, #tpu.memory_space<vmem>>, vector<1x128xf32>
    tpu.vector_store %arg16[%c0_40, %c0_41], %81 {strides = array<i32>} : memref<1x128xf32, #tpu.memory_space<vmem>>, vector<1x128xf32>,
    return
  }
  func.func @transform_0(%arg0: i32) -> (i32, i32) {
    %c0_i32 = arith.constant 0 : i32
    %c0_i32_0 = arith.constant 0 : i32
    return %c0_i32, %arg0 : i32, i32
  }
  func.func @transform_1(%arg0: i32) -> (i32, i32) {
    %c0_i32 = arith.constant 0 : i32
    %c0_i32_0 = arith.constant 0 : i32
    %c0_i32_1 = arith.constant 0 : i32
    return %c0_i32, %c0_i32_0 : i32, i32
  }
  func.func @transform_2(%arg0: i32) -> (i32, i32) {
    %c0_i32 = arith.constant 0 : i32
    %c0_i32_0 = arith.constant 0 : i32
    %c0_i32_1 = arith.constant 0 : i32
    return %c0_i32, %c0_i32_0 : i32, i32
  }
  func.func @transform_3(%arg0: i32) -> (i32, i32) {
    %c0_i32 = arith.constant 0 : i32
    %c0_i32_0 = arith.constant 0 : i32
    %c0_i32_1 = arith.constant 0 : i32
    return %c0_i32, %c0_i32_0 : i32, i32
  }
  func.func @transform_4(%arg0: i32) -> (i32, i32) {
    %c0_i32 = arith.constant 0 : i32
    %c0_i32_0 = arith.constant 0 : i32
    %c0_i32_1 = arith.constant 0 : i32
    return %c0_i32, %c0_i32_0 : i32, i32
  }
  func.func @transform_5(%arg0: i32) -> (i32, i32) {
    %c0_i32 = arith.constant 0 : i32
    %c0_i32_0 = arith.constant 0 : i32
    %c0_i32_1 = arith.constant 0 : i32
    return %c0_i32, %c0_i32_0 : i32, i32
  }
  func.func @transform_6(%arg0: i32) -> (i32, i32) {
    %c0_i32 = arith.constant 0 : i32
    %c0_i32_0 = arith.constant 0 : i32
    %c0_i32_1 = arith.constant 0 : i32
    return %c0_i32, %c0_i32_0 : i32, i32
  }
  func.func @transform_7(%arg0: i32) -> (i32, i32) {
    %c0_i32 = arith.constant 0 : i32
    %c0_i32_0 = arith.constant 0 : i32
    %c0_i32_1 = arith.constant 0 : i32
    return %c0_i32, %c0_i32_0 : i32, i32
  }
  func.func @transform_8(%arg0: i32) -> (i32, i32) {
    %c0_i32 = arith.constant 0 : i32
    %c0_i32_0 = arith.constant 0 : i32
    %c0_i32_1 = arith.constant 0 : i32
    return %c0_i32, %c0_i32_0 : i32, i32
  }
  func.func @transform_9(%arg0: i32) -> (i32, i32) {
    %c0_i32 = arith.constant 0 : i32
    %c0_i32_0 = arith.constant 0 : i32
    %c0_i32_1 = arith.constant 0 : i32
    return %c0_i32, %c0_i32_0 : i32, i32
  }
  func.func @transform_10(%arg0: i32) -> (i32, i32) {
    %c0_i32 = arith.constant 0 : i32
    %c0_i32_0 = arith.constant 0 : i32
    %c0_i32_1 = arith.constant 0 : i32
    return %c0_i32, %c0_i32_0 : i32, i32
  }
  func.func @transform_11(%arg0: i32) -> (i32, i32) {
    %c0_i32 = arith.constant 0 : i32
    %c0_i32_0 = arith.constant 0 : i32
    %c0_i32_1 = arith.constant 0 : i32
    return %c0_i32, %c0_i32_0 : i32, i32
  }
  func.func @transform_12(%arg0: i32) -> (i32, i32) {
    %c0_i32 = arith.constant 0 : i32
    %c0_i32_0 = arith.constant 0 : i32
    %c0_i32_1 = arith.constant 0 : i32
    return %c0_i32, %c0_i32_0 : i32, i32
  }
  func.func @transform_13(%arg0: i32) -> (i32, i32) {
    %c0_i32 = arith.constant 0 : i32
    %c0_i32_0 = arith.constant 0 : i32
    %c0_i32_1 = arith.constant 0 : i32
    return %c0_i32, %c0_i32_0 : i32, i32
  }
  func.func @transform_14(%arg0: i32) -> (i32, i32) {
    %c0_i32 = arith.constant 0 : i32
    %c0_i32_0 = arith.constant 0 : i32
    %c0_i32_1 = arith.constant 0 : i32
    return %c0_i32, %c0_i32_0 : i32, i32
  }
  func.func @transform_15(%arg0: i32) -> (i32, i32) {
    %c0_i32 = arith.constant 0 : i32
    %c0_i32_0 = arith.constant 0 : i32
    return %c0_i32, %arg0 : i32, i32
  }
}

</mosaic_0001>

<llo_original>
// kernel: _impl.1
$region0: #{_impl.1}
  #allocation0 [shape = 'u32[]', space=smem, size = 0x4, offset = 0x4, fixed_abs, tag = 'smem constant byte address 0x4 - core index']
  #allocation1 [shape = 'u32[72,128]{1,0:T(1,128)}', space=vmem, size = 0x9000, scoped, tag = 'internal scratch']
  #allocation2 [shape = 'f32[1,1]{1,0:T(1,128)S(1)}', space=vmem, size = 0x200, scoped, tag = 'scoped memory for _impl.1']
  %s0 = inlined_call_operand.vmem [shape: f32[32,128], index: 0, kind: input, shape index: {}]
  %s1 = inlined_call_operand.vmem [shape: f32[256,32], index: 1, kind: input, shape index: {}]
  %s2 = inlined_call_operand.vmem [shape: f32[256,1], index: 2, kind: input, shape index: {}]
  %s3 = inlined_call_operand.vmem [shape: f32[4,256], index: 3, kind: input, shape index: {}]
  %s4 = inlined_call_operand.vmem [shape: f32[4,1], index: 4, kind: input, shape index: {}]
  %s5 = inlined_call_operand.vmem [shape: f32[4,2], index: 5, kind: input, shape index: {}]
  %s6 = inlined_call_operand.vmem [shape: f32[16,4], index: 6, kind: input, shape index: {}]
  %s7 = inlined_call_operand.vmem [shape: f32[16,4], index: 7, kind: input, shape index: {}]
  %s8 = inlined_call_operand.vmem [shape: f32[16,16], index: 8, kind: input, shape index: {}]
  %s9 = inlined_call_operand.vmem [shape: f32[64,16], index: 9, kind: input, shape index: {}]
  %s10 = inlined_call_operand.vmem [shape: f32[64,1], index: 10, kind: input, shape index: {}]
  %s11 = inlined_call_operand.vmem [shape: f32[32,64], index: 11, kind: input, shape index: {}]
  %s12 = inlined_call_operand.vmem [shape: f32[32,1], index: 12, kind: input, shape index: {}]
  %s13 = inlined_call_operand.vmem [shape: f32[1,32], index: 13, kind: input, shape index: {}]
  %s14 = inlined_call_operand.<no memory space> [shape: f32[1,1], index: 14, kind: input, shape index: {}]
  %s15 = inlined_call_operand.vmem [shape: f32[1,128], index: 15, kind: output, shape index: {}]
  %s16 = sld [smem:[#allocation0]]
  $region70: #{_impl.1} parent=0
    _
  %s18 = ssub.s32 1, %s16
  %s19 = scalar_select 0, %s18, %s16
  %v20 = vstv %s14
  %21 = vst [vmem:[#allocation2] sm:$0x1] %v20
  // Predicated region
  $region2: #{_impl.1} parent=0 // pred_check
    _
  $region3: #{_impl.1} parent=0 // pred_check_branch
    %23 = sbr.rel (0) target = $region5
  $region4: #{_impl.1} parent=0 // pred_region
    _
  $region5: #{_impl.1} parent=0 // pred_fallthru
    _
  // Predicated region
  $region6: #{_impl.1} parent=0 // pred_check
    _
  $region7: #{_impl.1} parent=0 // pred_check_branch
    %25 = sbr.rel (0) target = $region9
  $region8: #{_impl.1} parent=0 // pred_region
    _
  $region9: #{_impl.1} parent=0 // pred_fallthru
    _
  // Predicated region
  $region10: #{_impl.1} parent=0 // pred_check
    _
  $region11: #{_impl.1} parent=0 // pred_check_branch
    %27 = sbr.rel (0) target = $region13
  $region12: #{_impl.1} parent=0 // pred_region
    _
  $region13: #{_impl.1} parent=0 // pred_fallthru
    _
  // Predicated region
  $region14: #{_impl.1} parent=0 // pred_check
    _
  $region15: #{_impl.1} parent=0 // pred_check_branch
    %29 = sbr.rel (0) target = $region17
  $region16: #{_impl.1} parent=0 // pred_region
    _
  $region17: #{_impl.1} parent=0 // pred_fallthru
    _
  // Predicated region
  $region18: #{_impl.1} parent=0 // pred_check
    _
  $region19: #{_impl.1} parent=0 // pred_check_branch
    %31 = sbr.rel (0) target = $region21
  $region20: #{_impl.1} parent=0 // pred_region
    _
  $region21: #{_impl.1} parent=0 // pred_fallthru
    _
  // Predicated region
  $region22: #{_impl.1} parent=0 // pred_check
    _
  $region23: #{_impl.1} parent=0 // pred_check_branch
    %33 = sbr.rel (0) target = $region25
  $region24: #{_impl.1} parent=0 // pred_region
    _
  $region25: #{_impl.1} parent=0 // pred_fallthru
    _
  // Predicated region
  $region26: #{_impl.1} parent=0 // pred_check
    _
  $region27: #{_impl.1} parent=0 // pred_check_branch
    %35 = sbr.rel (0) target = $region29
  $region28: #{_impl.1} parent=0 // pred_region
    _
  $region29: #{_impl.1} parent=0 // pred_fallthru
    _
  // Predicated region
  $region30: #{_impl.1} parent=0 // pred_check
    _
  $region31: #{_impl.1} parent=0 // pred_check_branch
    %37 = sbr.rel (0) target = $region33
  $region32: #{_impl.1} parent=0 // pred_region
    _
  $region33: #{_impl.1} parent=0 // pred_fallthru
    _
  // Predicated region
  $region34: #{_impl.1} parent=0 // pred_check
    _
  $region35: #{_impl.1} parent=0 // pred_check_branch
    %39 = sbr.rel (0) target = $region37
  $region36: #{_impl.1} parent=0 // pred_region
    _
  $region37: #{_impl.1} parent=0 // pred_fallthru
    _
  // Predicated region
  $region38: #{_impl.1} parent=0 // pred_check
    _
  $region39: #{_impl.1} parent=0 // pred_check_branch
    %41 = sbr.rel (0) target = $region41
  $region40: #{_impl.1} parent=0 // pred_region
    _
  $region41: #{_impl.1} parent=0 // pred_fallthru
    _
  // Predicated region
  $region42: #{_impl.1} parent=0 // pred_check
    _
  $region43: #{_impl.1} parent=0 // pred_check_branch
    %43 = sbr.rel (0) target = $region45
  $region44: #{_impl.1} parent=0 // pred_region
    _
  $region45: #{_impl.1} parent=0 // pred_fallthru
    _
  // Predicated region
  $region46: #{_impl.1} parent=0 // pred_check
    _
  $region47: #{_impl.1} parent=0 // pred_check_branch
    %45 = sbr.rel (0) target = $region49
  $region48: #{_impl.1} parent=0 // pred_region
    _
  $region49: #{_impl.1} parent=0 // pred_fallthru
    _
  // Predicated region
  $region50: #{_impl.1} parent=0 // pred_check
    _
  $region51: #{_impl.1} parent=0 // pred_check_branch
    %47 = sbr.rel (0) target = $region53
  $region52: #{_impl.1} parent=0 // pred_region
    _
  $region53: #{_impl.1} parent=0 // pred_fallthru
    _
  // Predicated region
  $region54: #{_impl.1} parent=0 // pred_check
    _
  $region55: #{_impl.1} parent=0 // pred_check_branch
    %49 = sbr.rel (0) target = $region57
  $region56: #{_impl.1} parent=0 // pred_region
    _
  $region57: #{_impl.1} parent=0 // pred_fallthru
    _
  // Predicated region
  $region58: #{_impl.1} parent=0 // pred_check
    _
  $region59: #{_impl.1} parent=0 // pred_check_branch
    %51 = sbr.rel (0) target = $region61
  $region60: #{_impl.1} parent=0 // pred_region
    _
  $region61: #{_impl.1} parent=0 // pred_fallthru
    _
  %v52 = vld [vmem:[%s1] sm:$0xff]
  %v53 = vld [vmem:[%s1 + $0x8] sm:$0xff]
  %v54 = vld [vmem:[%s1 + $0x10] sm:$0xff]
  %v55 = vld [vmem:[%s1 + $0x18] sm:$0xff]
  %v56 = vld [vmem:[%s1 + $0x20] sm:$0xff]
  %v57 = vld [vmem:[%s1 + $0x28] sm:$0xff]
  %v58 = vld [vmem:[%s1 + $0x30] sm:$0xff]
  %v59 = vld [vmem:[%s1 + $0x38] sm:$0xff]
  %v60 = vld [vmem:[%s1 + $0x40] sm:$0xff]
  %v61 = vld [vmem:[%s1 + $0x48] sm:$0xff]
  %v62 = vld [vmem:[%s1 + $0x50] sm:$0xff]
  %v63 = vld [vmem:[%s1 + $0x58] sm:$0xff]
  %v64 = vld [vmem:[%s1 + $0x60] sm:$0xff]
  %v65 = vld [vmem:[%s1 + $0x68] sm:$0xff]
  %v66 = vld [vmem:[%s1 + $0x70] sm:$0xff]
  %v67 = vld [vmem:[%s1 + $0x78] sm:$0xff]
  %v68 = vld [vmem:[%s1 + $0x80] sm:$0xff]
  %v69 = vld [vmem:[%s1 + $0x88] sm:$0xff]
  %v70 = vld [vmem:[%s1 + $0x90] sm:$0xff]
  %v71 = vld [vmem:[%s1 + $0x98] sm:$0xff]
  %v72 = vld [vmem:[%s1 + $0xa0] sm:$0xff]
  %v73 = vld [vmem:[%s1 + $0xa8] sm:$0xff]
  %v74 = vld [vmem:[%s1 + $0xb0] sm:$0xff]
  %v75 = vld [vmem:[%s1 + $0xb8] sm:$0xff]
  %v76 = vld [vmem:[%s1 + $0xc0] sm:$0xff]
  %v77 = vld [vmem:[%s1 + $0xc8] sm:$0xff]
  %v78 = vld [vmem:[%s1 + $0xd0] sm:$0xff]
  %v79 = vld [vmem:[%s1 + $0xd8] sm:$0xff]
  %v80 = vld [vmem:[%s1 + $0xe0] sm:$0xff]
  %v81 = vld [vmem:[%s1 + $0xe8] sm:$0xff]
  %v82 = vld [vmem:[%s1 + $0xf0] sm:$0xff]
  %v83 = vld [vmem:[%s1 + $0xf8] sm:$0xff]
  %v84 = vld [vmem:[%s0] sm:$0xff]
  %v85 = vld [vmem:[%s0 + $0x8] sm:$0xff]
  %v86 = vld [vmem:[%s0 + $0x10] sm:$0xff]
  %v87 = vld [vmem:[%s0 + $0x18] sm:$0xff]
  %v88 = vld [vmem:[%s2] sm:$0xff]
  %v89 = vld [vmem:[%s2 + $0x8] sm:$0xff]
  %v90 = vld [vmem:[%s2 + $0x10] sm:$0xff]
  %v91 = vld [vmem:[%s2 + $0x18] sm:$0xff]
  %v92 = vld [vmem:[%s2 + $0x20] sm:$0xff]
  %v93 = vld [vmem:[%s2 + $0x28] sm:$0xff]
  %v94 = vld [vmem:[%s2 + $0x30] sm:$0xff]
  %v95 = vld [vmem:[%s2 + $0x38] sm:$0xff]
  %v96 = vld [vmem:[%s2 + $0x40] sm:$0xff]
  %v97 = vld [vmem:[%s2 + $0x48] sm:$0xff]
  %v98 = vld [vmem:[%s2 + $0x50] sm:$0xff]
  %v99 = vld [vmem:[%s2 + $0x58] sm:$0xff]
  %v100 = vld [vmem:[%s2 + $0x60] sm:$0xff]
  %v101 = vld [vmem:[%s2 + $0x68] sm:$0xff]
  %v102 = vld [vmem:[%s2 + $0x70] sm:$0xff]
  %v103 = vld [vmem:[%s2 + $0x78] sm:$0xff]
  %v104 = vld [vmem:[%s2 + $0x80] sm:$0xff]
  %v105 = vld [vmem:[%s2 + $0x88] sm:$0xff]
  %v106 = vld [vmem:[%s2 + $0x90] sm:$0xff]
  %v107 = vld [vmem:[%s2 + $0x98] sm:$0xff]
  %v108 = vld [vmem:[%s2 + $0xa0] sm:$0xff]
  %v109 = vld [vmem:[%s2 + $0xa8] sm:$0xff]
  %v110 = vld [vmem:[%s2 + $0xb0] sm:$0xff]
  %v111 = vld [vmem:[%s2 + $0xb8] sm:$0xff]
  %v112 = vld [vmem:[%s2 + $0xc0] sm:$0xff]
  %v113 = vld [vmem:[%s2 + $0xc8] sm:$0xff]
  %v114 = vld [vmem:[%s2 + $0xd0] sm:$0xff]
  %v115 = vld [vmem:[%s2 + $0xd8] sm:$0xff]
  %v116 = vld [vmem:[%s2 + $0xe0] sm:$0xff]
  %v117 = vld [vmem:[%s2 + $0xe8] sm:$0xff]
  %v118 = vld [vmem:[%s2 + $0xf0] sm:$0xff]
  %v119 = vld [vmem:[%s2 + $0xf8] sm:$0xff]
  %121 = vset.pattern.permute.xlu0 0
  %122 = vperm.xlu0 %121, %v88
  %v123 = vpop.permute.xlu0 %122
  %126 = vset.pattern.permute.xlu0 0
  %127 = vperm.xlu0 %126, %v89
  %v128 = vpop.permute.xlu0 %127
  %131 = vset.pattern.permute.xlu0 0
  %132 = vperm.xlu0 %131, %v90
  %v133 = vpop.permute.xlu0 %132
  %136 = vset.pattern.permute.xlu0 0
  %137 = vperm.xlu0 %136, %v91
  %v138 = vpop.permute.xlu0 %137
  %141 = vset.pattern.permute.xlu0 0
  %142 = vperm.xlu0 %141, %v92
  %v143 = vpop.permute.xlu0 %142
  %146 = vset.pattern.permute.xlu0 0
  %147 = vperm.xlu0 %146, %v93
  %v148 = vpop.permute.xlu0 %147
  %151 = vset.pattern.permute.xlu0 0
  %152 = vperm.xlu0 %151, %v94
  %v153 = vpop.permute.xlu0 %152
  %156 = vset.pattern.permute.xlu0 0
  %157 = vperm.xlu0 %156, %v95
  %v158 = vpop.permute.xlu0 %157
  %161 = vset.pattern.permute.xlu0 0
  %162 = vperm.xlu0 %161, %v96
  %v163 = vpop.permute.xlu0 %162
  %166 = vset.pattern.permute.xlu0 0
  %167 = vperm.xlu0 %166, %v97
  %v168 = vpop.permute.xlu0 %167
  %171 = vset.pattern.permute.xlu0 0
  %172 = vperm.xlu0 %171, %v98
  %v173 = vpop.permute.xlu0 %172
  %176 = vset.pattern.permute.xlu0 0
  %177 = vperm.xlu0 %176, %v99
  %v178 = vpop.permute.xlu0 %177
  %181 = vset.pattern.permute.xlu0 0
  %182 = vperm.xlu0 %181, %v100
  %v183 = vpop.permute.xlu0 %182
  %186 = vset.pattern.permute.xlu0 0
  %187 = vperm.xlu0 %186, %v101
  %v188 = vpop.permute.xlu0 %187
  %191 = vset.pattern.permute.xlu0 0
  %192 = vperm.xlu0 %191, %v102
  %v193 = vpop.permute.xlu0 %192
  %196 = vset.pattern.permute.xlu0 0
  %197 = vperm.xlu0 %196, %v103
  %v198 = vpop.permute.xlu0 %197
  %201 = vset.pattern.permute.xlu0 0
  %202 = vperm.xlu0 %201, %v104
  %v203 = vpop.permute.xlu0 %202
  %206 = vset.pattern.permute.xlu0 0
  %207 = vperm.xlu0 %206, %v105
  %v208 = vpop.permute.xlu0 %207
  %211 = vset.pattern.permute.xlu0 0
  %212 = vperm.xlu0 %211, %v106
  %v213 = vpop.permute.xlu0 %212
  %216 = vset.pattern.permute.xlu0 0
  %217 = vperm.xlu0 %216, %v107
  %v218 = vpop.permute.xlu0 %217
  %221 = vset.pattern.permute.xlu0 0
  %222 = vperm.xlu0 %221, %v108
  %v223 = vpop.permute.xlu0 %222
  %226 = vset.pattern.permute.xlu0 0
  %227 = vperm.xlu0 %226, %v109
  %v228 = vpop.permute.xlu0 %227
  %231 = vset.pattern.permute.xlu0 0
  %232 = vperm.xlu0 %231, %v110
  %v233 = vpop.permute.xlu0 %232
  %236 = vset.pattern.permute.xlu0 0
  %237 = vperm.xlu0 %236, %v111
  %v238 = vpop.permute.xlu0 %237
  %241 = vset.pattern.permute.xlu0 0
  %242 = vperm.xlu0 %241, %v112
  %v243 = vpop.permute.xlu0 %242
  %246 = vset.pattern.permute.xlu0 0
  %247 = vperm.xlu0 %246, %v113
  %v248 = vpop.permute.xlu0 %247
  %251 = vset.pattern.permute.xlu0 0
  %252 = vperm.xlu0 %251, %v114
  %v253 = vpop.permute.xlu0 %252
  %256 = vset.pattern.permute.xlu0 0
  %257 = vperm.xlu0 %256, %v115
  %v258 = vpop.permute.xlu0 %257
  %261 = vset.pattern.permute.xlu0 0
  %262 = vperm.xlu0 %261, %v116
  %v263 = vpop.permute.xlu0 %262
  %266 = vset.pattern.permute.xlu0 0
  %267 = vperm.xlu0 %266, %v117
  %v268 = vpop.permute.xlu0 %267
  %271 = vset.pattern.permute.xlu0 0
  %272 = vperm.xlu0 %271, %v118
  %v273 = vpop.permute.xlu0 %272
  %276 = vset.pattern.permute.xlu0 0
  %277 = vperm.xlu0 %276, %v119
  %v278 = vpop.permute.xlu0 %277
  %vm280 = vcmask 261120
  %v282 = vsel %vm280, %v52, 0
  %v285 = vsel %vm280, %v53, 0
  %v288 = vsel %vm280, %v54, 0
  %v291 = vsel %vm280, %v55, 0
  %v294 = vsel %vm280, %v56, 0
  %v297 = vsel %vm280, %v57, 0
  %v300 = vsel %vm280, %v58, 0
  %v303 = vsel %vm280, %v59, 0
  %v306 = vsel %vm280, %v60, 0
  %v309 = vsel %vm280, %v61, 0
  %v312 = vsel %vm280, %v62, 0
  %v315 = vsel %vm280, %v63, 0
  %v318 = vsel %vm280, %v64, 0
  %v321 = vsel %vm280, %v65, 0
  %v324 = vsel %vm280, %v66, 0
  %v327 = vsel %vm280, %v67, 0
  %v330 = vsel %vm280, %v68, 0
  %v333 = vsel %vm280, %v69, 0
  %v336 = vsel %vm280, %v70, 0
  %v339 = vsel %vm280, %v71, 0
  %v342 = vsel %vm280, %v72, 0
  %v345 = vsel %vm280, %v73, 0
  %v348 = vsel %vm280, %v74, 0
  %v351 = vsel %vm280, %v75, 0
  %v354 = vsel %vm280, %v76, 0
  %v357 = vsel %vm280, %v77, 0
  %v360 = vsel %vm280, %v78, 0
  %v363 = vsel %vm280, %v79, 0
  %v366 = vsel %vm280, %v80, 0
  %v369 = vsel %vm280, %v81, 0
  %v372 = vsel %vm280, %v82, 0
  %v375 = vsel %vm280, %v83, 0
  %377 = vmatpush.msra.mxu0 0.0
  %378 = vmatpush.msra.mxu0 0.0
  %379 = vmatpush.msra.mxu0 0.0
  %380 = vmatpush.msra.mxu0 0.0
  %381 = vmatpush.msra.mxu0 0.0
  %382 = vmatpush.msra.mxu0 0.0
  %383 = vmatpush.msra.mxu0 0.0
  %384 = vmatpush.msra.mxu0 0.0
  %385 = vmatpush.msra.mxu0 0.0
  %386 = vmatpush.msra.mxu0 0.0
  %387 = vmatpush.msra.mxu0 0.0
  %388 = vmatpush.msra.mxu0 0.0
  %389 = vmatpush.msra.mxu0 %v87
  %390 = vmatpush.msra.mxu0 %v86
  %391 = vmatpush.msra.mxu0 %v85
  %392 = vmatpush.msra.mxu0 %v84
  %393 = vmatmul.f32.gmra.mxu0 %v282
  %v394 = vpop.f32.mrf.mxu0
  %v395 = vadd.f32 %v123, %v394
  %396 = vmatmul.f32.gmra.mxu0 %v285
  %v397 = vpop.f32.mrf.mxu0
  %v398 = vadd.f32 %v128, %v397
  %399 = vmatmul.f32.gmra.mxu0 %v288
  %v400 = vpop.f32.mrf.mxu0
  %v401 = vadd.f32 %v133, %v400
  %402 = vmatmul.f32.gmra.mxu0 %v291
  %v403 = vpop.f32.mrf.mxu0
  %v404 = vadd.f32 %v138, %v403
  %405 = vmatmul.f32.gmra.mxu0 %v294
  %v406 = vpop.f32.mrf.mxu0
  %v407 = vadd.f32 %v143, %v406
  %408 = vmatmul.f32.gmra.mxu0 %v297
  %v409 = vpop.f32.mrf.mxu0
  %v410 = vadd.f32 %v148, %v409
  %411 = vmatmul.f32.gmra.mxu0 %v300
  %v412 = vpop.f32.mrf.mxu0
  %v413 = vadd.f32 %v153, %v412
  %414 = vmatmul.f32.gmra.mxu0 %v303
  %v415 = vpop.f32.mrf.mxu0
  %v416 = vadd.f32 %v158, %v415
  %417 = vmatmul.f32.gmra.mxu0 %v306
  %v418 = vpop.f32.mrf.mxu0
  %v419 = vadd.f32 %v163, %v418
  %420 = vmatmul.f32.gmra.mxu0 %v309
  %v421 = vpop.f32.mrf.mxu0
  %v422 = vadd.f32 %v168, %v421
  %423 = vmatmul.f32.gmra.mxu0 %v312
  %v424 = vpop.f32.mrf.mxu0
  %v425 = vadd.f32 %v173, %v424
  %426 = vmatmul.f32.gmra.mxu0 %v315
  %v427 = vpop.f32.mrf.mxu0
  %v428 = vadd.f32 %v178, %v427
  %429 = vmatmul.f32.gmra.mxu0 %v318
  %v430 = vpop.f32.mrf.mxu0
  %v431 = vadd.f32 %v183, %v430
  %432 = vmatmul.f32.gmra.mxu0 %v321
  %v433 = vpop.f32.mrf.mxu0
  %v434 = vadd.f32 %v188, %v433
  %435 = vmatmul.f32.gmra.mxu0 %v324
  %v436 = vpop.f32.mrf.mxu0
  %v437 = vadd.f32 %v193, %v436
  %438 = vmatmul.f32.gmra.mxu0 %v327
  %v439 = vpop.f32.mrf.mxu0
  %v440 = vadd.f32 %v198, %v439
  %441 = vmatmul.f32.gmra.mxu0 %v330
  %v442 = vpop.f32.mrf.mxu0
  %v443 = vadd.f32 %v203, %v442
  %444 = vmatmul.f32.gmra.mxu0 %v333
  %v445 = vpop.f32.mrf.mxu0
  %v446 = vadd.f32 %v208, %v445
  %447 = vmatmul.f32.gmra.mxu0 %v336
  %v448 = vpop.f32.mrf.mxu0
  %v449 = vadd.f32 %v213, %v448
  %450 = vmatmul.f32.gmra.mxu0 %v339
  %v451 = vpop.f32.mrf.mxu0
  %v452 = vadd.f32 %v218, %v451
  %453 = vmatmul.f32.gmra.mxu0 %v342
  %v454 = vpop.f32.mrf.mxu0
  %v455 = vadd.f32 %v223, %v454
  %456 = vmatmul.f32.gmra.mxu0 %v345
  %v457 = vpop.f32.mrf.mxu0
  %v458 = vadd.f32 %v228, %v457
  %459 = vmatmul.f32.gmra.mxu0 %v348
  %v460 = vpop.f32.mrf.mxu0
  %v461 = vadd.f32 %v233, %v460
  %462 = vmatmul.f32.gmra.mxu0 %v351
  %v463 = vpop.f32.mrf.mxu0
  %v464 = vadd.f32 %v238, %v463
  %465 = vmatmul.f32.gmra.mxu0 %v354
  %v466 = vpop.f32.mrf.mxu0
  %v467 = vadd.f32 %v243, %v466
  %468 = vmatmul.f32.gmra.mxu0 %v357
  %v469 = vpop.f32.mrf.mxu0
  %v470 = vadd.f32 %v248, %v469
  %471 = vmatmul.f32.gmra.mxu0 %v360
  %v472 = vpop.f32.mrf.mxu0
  %v473 = vadd.f32 %v253, %v472
  %474 = vmatmul.f32.gmra.mxu0 %v363
  %v475 = vpop.f32.mrf.mxu0
  %v476 = vadd.f32 %v258, %v475
  %477 = vmatmul.f32.gmra.mxu0 %v366
  %v478 = vpop.f32.mrf.mxu0
  %v479 = vadd.f32 %v263, %v478
  %480 = vmatmul.f32.gmra.mxu0 %v369
  %v481 = vpop.f32.mrf.mxu0
  %v482 = vadd.f32 %v268, %v481
  %483 = vmatmul.f32.gmra.mxu0 %v372
  %v484 = vpop.f32.mrf.mxu0
  %v485 = vadd.f32 %v273, %v484
  %486 = vmatmul.f32.gmra.mxu0 %v375
  %v487 = vpop.f32.mrf.mxu0
  %v488 = vadd.f32 %v278, %v487
  %489 = vdwg.mxu0
  %v490 = vmax.f32 %v395, 0.0
  %v491 = vmax.f32 %v398, 0.0
  %v492 = vmax.f32 %v401, 0.0
  %v493 = vmax.f32 %v404, 0.0
  %v494 = vmax.f32 %v407, 0.0
  %v495 = vmax.f32 %v410, 0.0
  %v496 = vmax.f32 %v413, 0.0
  %v497 = vmax.f32 %v416, 0.0
  %v498 = vmax.f32 %v419, 0.0
  %v499 = vmax.f32 %v422, 0.0
  %v500 = vmax.f32 %v425, 0.0
  %v501 = vmax.f32 %v428, 0.0
  %v502 = vmax.f32 %v431, 0.0
  %v503 = vmax.f32 %v434, 0.0
  %v504 = vmax.f32 %v437, 0.0
  %v505 = vmax.f32 %v440, 0.0
  %v506 = vmax.f32 %v443, 0.0
  %v507 = vmax.f32 %v446, 0.0
  %v508 = vmax.f32 %v449, 0.0
  %v509 = vmax.f32 %v452, 0.0
  %v510 = vmax.f32 %v455, 0.0
  %v511 = vmax.f32 %v458, 0.0
  %v512 = vmax.f32 %v461, 0.0
  %v513 = vmax.f32 %v464, 0.0
  %v514 = vmax.f32 %v467, 0.0
  %v515 = vmax.f32 %v470, 0.0
  %v516 = vmax.f32 %v473, 0.0
  %v517 = vmax.f32 %v476, 0.0
  %v518 = vmax.f32 %v479, 0.0
  %v519 = vmax.f32 %v482, 0.0
  %v520 = vmax.f32 %v485, 0.0
  %v521 = vmax.f32 %v488, 0.0
  %v522 = vld [vmem:[%s3] sm:$0xff]
  %v523 = vld [vmem:[%s4] sm:$0xf]
  %525 = vset.pattern.permute.xlu0 0
  %526 = vperm.xlu0 %525, %v523
  %v527 = vpop.permute.xlu0 %526
  %530 = vst [vmem:[#allocation1] ss:$2 sm:$0xff] %v522
  %v531 = vld.sshfl [vmem:[#allocation1] sm:$0xff pattern:$0x75316420]
  %v532 = vld.sshfl [vmem:[#allocation1 + $0x8] sm:$0xff pattern:$0x75316420]
  %535 = vmatpush.msra.mxu0 %v505
  %536 = vmatpush.msra.mxu0 %v504
  %537 = vmatpush.msra.mxu0 %v503
  %538 = vmatpush.msra.mxu0 %v502
  %539 = vmatpush.msra.mxu0 %v501
  %540 = vmatpush.msra.mxu0 %v500
  %541 = vmatpush.msra.mxu0 %v499
  %542 = vmatpush.msra.mxu0 %v498
  %543 = vmatpush.msra.mxu0 %v497
  %544 = vmatpush.msra.mxu0 %v496
  %545 = vmatpush.msra.mxu0 %v495
  %546 = vmatpush.msra.mxu0 %v494
  %547 = vmatpush.msra.mxu0 %v493
  %548 = vmatpush.msra.mxu0 %v492
  %549 = vmatpush.msra.mxu0 %v491
  %550 = vmatpush.msra.mxu0 %v490
  %551 = vmatmul.f32.gmra.mxu0 %v531
  %v552 = vpop.f32.mrf.mxu0
  %v553 = vadd.f32 %v527, %v552
  %554 = vdwg.mxu0
  %555 = vmatpush.msra.mxu0 %v521
  %556 = vmatpush.msra.mxu0 %v520
  %557 = vmatpush.msra.mxu0 %v519
  %558 = vmatpush.msra.mxu0 %v518
  %559 = vmatpush.msra.mxu0 %v517
  %560 = vmatpush.msra.mxu0 %v516
  %561 = vmatpush.msra.mxu0 %v515
  %562 = vmatpush.msra.mxu0 %v514
  %563 = vmatpush.msra.mxu0 %v513
  %564 = vmatpush.msra.mxu0 %v512
  %565 = vmatpush.msra.mxu0 %v511
  %566 = vmatpush.msra.mxu0 %v510
  %567 = vmatpush.msra.mxu0 %v509
  %568 = vmatpush.msra.mxu0 %v508
  %569 = vmatpush.msra.mxu0 %v507
  %570 = vmatpush.msra.mxu0 %v506
  %571 = vmatmul.f32.gmra.mxu0 %v532
  %v572 = vpop.f32.mrf.mxu0
  %v573 = vadd.f32 %v553, %v572
  %574 = vdwg.mxu0
  %v575 = vand.u32 2147483647, %v573
  %vm576 = vcmp.le.f32.partialorder %v575, 0.7853982
  %vm577 = vcmp.lt.s32.totalorder %v573, 0
  %v578 = vand.u32 %v573, 2139095040
  %v579 = vshrl.u32 %v578, 23
  %v580 = vsub.s32 %v579, 127
  %v581 = vand.u32 2147483647, %v573
  %v582 = vand.u32 %v581, 8388607
  %v583 = vor.u32 %v582, 8388608
  %v584 = vsub.s32 0, %v583
  %v585 = vadd.s32 %v580, 1
  %vm586 = vcmp.gt.s32.totalorder %v585, 0
  %v587 = vsel %vm586, %v585, 0
  %v588 = vshrl.u32 %v587, 5
  %v589 = vand.u32 %v587, 31
  %v590 = vsub.s32 32, %v589
  %v591 = vshrl.u32 683565275, %v590
  %v592 = vshll.u32 683565275, %v589
  %v593 = vshrl.u32 2475754826, %v590
  %v594 = vor.u32 %v592, %v593
  %v595 = vshll.u32 2475754826, %v589
  %v596 = vshrl.u32 2131351028, %v590
  %v597 = vor.u32 %v595, %v596
  %v598 = vshll.u32 2131351028, %v589
  %v599 = vshrl.u32 2102212464, %v590
  %v600 = vor.u32 %v598, %v599
  %v601 = vshll.u32 2102212464, %v589
  %v602 = vshrl.u32 920167782, %v590
  %v603 = vor.u32 %v601, %v602
  %v604 = vshll.u32 920167782, %v589
  %v605 = vshrl.u32 1326507024, %v590
  %v606 = vor.u32 %v604, %v605
  %vm607 = vcmp.lt.s32.totalorder %v588, 1
  %vm608 = vcmp.lt.s32.totalorder %v588, 2
  %vm609 = vcmp.lt.s32.totalorder %v588, 3
  %vm610 = vcmp.lt.s32.totalorder %v588, 4
  %v611 = vsel %vm607, %v591, %v594
  %v612 = vsel %vm610, %v600, 2102212464
  %v613 = vsel %vm609, %v597, %v612
  %v614 = vsel %vm608, %v611, %v613
  %v615 = vsel %vm607, %v594, %v597
  %v616 = vsel %vm610, %v603, 920167782
  %v617 = vsel %vm609, %v600, %v616
  %v618 = vsel %vm608, %v615, %v617
  %v619 = vsel %vm607, %v597, %v600
  %v620 = vsel %vm610, %v606, 1326507024
  %v621 = vsel %vm609, %v603, %v620
  %v622 = vsel %vm608, %v619, %v621
  %v623 = vshll.u32 %v583, 8
  %v624 = vand.u32 %v623, 65535
  %v625 = vshrl.u32 %v623, 16
  %v626 = vand.u32 %v622, 65535
  %v627 = vshrl.u32 %v622, 16
  %v628 = vmul.u32 %v624, %v626
  %v629 = vmul.u32 %v624, %v627
  %v630 = vmul.u32 %v625, %v626
  %v631 = vmul.u32 %v625, %v627
  %v632 = vshll.u32 %v629, 16
  %v633 = vshrl.u32 %v629, 16
  %v634 = vshll.u32 %v630, 16
  %v635 = vshrl.u32 %v630, 16
  %vm636 = vc.u32 %v628, %v632
  %v637 = vsel %vm636, 1, 0
  %v638 = vadd.s32 %v628, %v632
  %v639 = vadd.s32 %v631, %v637
  %vm640 = vc.u32 %v638, %v634
  %v641 = vsel %vm640, 1, 0
  %v642 = vadd.s32 %v638, %v634
  %v643 = vadd.s32 %v639, %v641
  %v644 = vadd.s32 %v643, %v633
  %v645 = vadd.s32 %v644, %v635
  %v646 = vand.u32 %v623, 65535
  %v647 = vshrl.u32 %v623, 16
  %v648 = vand.u32 %v618, 65535
  %v649 = vshrl.u32 %v618, 16
  %v650 = vmul.u32 %v646, %v648
  %v651 = vmul.u32 %v646, %v649
  %v652 = vmul.u32 %v647, %v648
  %v653 = vmul.u32 %v647, %v649
  %v654 = vshll.u32 %v651, 16
  %v655 = vshrl.u32 %v651, 16
  %v656 = vshll.u32 %v652, 16
  %v657 = vshrl.u32 %v652, 16
  %vm658 = vc.u32 %v650, %v654
  %v659 = vsel %vm658, 1, 0
  %v660 = vadd.s32 %v650, %v654
  %v661 = vadd.s32 %v653, %v659
  %vm662 = vc.u32 %v660, %v656
  %v663 = vsel %vm662, 1, 0
  %v664 = vadd.s32 %v660, %v656
  %v665 = vadd.s32 %v661, %v663
  %v666 = vadd.s32 %v665, %v655
  %v667 = vadd.s32 %v666, %v657
  %v668 = vmul.u32 %v623, %v614
  %v669 = vadd.s32 %v645, %v664
  %vm670 = vc.u32 %v645, %v664
  %v671 = vadd.s32 %v667, 1
  %v672 = vsel %vm670, %v671, %v667
  %v673 = vadd.s32 %v668, %v672
  %v674 = vadd.s32 %v673, 536870912
  %v675 = vshrl.u32 %v674, 30
  %v676 = vshll.u32 %v675, 30
  %v677 = vsub.s32 %v673, %v676
  %vm678 = vcmp.lt.s32.totalorder %v677, 0
  %v679 = vsub.s32 0, %v677
  %v680 = vsel %vm678, %v679, %v677
  %v681 = vclz %v680
  %v682 = vsub.s32 %v681, 2
  %vm683 = vcmp.gt.s32.totalorder 0, %v682
  %v684 = vsel %vm683, 0, %v682
  %v685 = vsub.s32 32, %v684
  %v686 = vshll.u32 %v677, %v684
  %v687 = vshrl.u32 %v669, %v685
  %v688 = vor.u32 %v686, %v687
  %v689 = vsub.s32 4294967266, %v684
  %v690 = vadd.s32 %v689, 127
  %v691 = vshll.u32 %v690, 23
  %v692 = vor.u32 4788187, %v691
  %v693 = vand.u32 2147483647, %v692
  %v695 = vcvt.s32.f32 %v688
  %v696 = vmul.f32 %v695, %v693
  %v697 = vxor.u32 %v696, 2147483648
  %v698 = vsel %vm577, %v697, %v696
  %v699 = vsub.s32 4, %v675
  %v700 = vsel %vm577, %v699, %v675
  %v701 = vsel %vm576, %v573, %v698
  %v702 = vsel %vm576, 0, %v700
  %v703 = vmul.f32 %v701, %v701
  %v704 = vmul.f32 %v703, -0.001358992
  %v705 = vadd.f32 %v704, 0.041655596
  %v706 = vmul.f32 %v703, %v705
  %v707 = vadd.f32 %v706, -0.4999988
  %v708 = vmul.f32 %v703, %v707
  %v709 = vadd.f32 1.0, %v708
  %v710 = vmul.f32 %v701, %v701
  %v711 = vmul.f32 %v710, -0.00019511016
  %v712 = vadd.f32 %v711, 0.008332121
  %v713 = vmul.f32 %v710, %v712
  %v714 = vadd.f32 %v713, -0.16666654
  %v715 = vmul.f32 %v710, %v714
  %v716 = vadd.f32 %v715, 1.0
  %v717 = vmul.f32 %v716, %v701
  %vm718 = vweird.f32 %v573
  %v719 = vand.u32 %v702, 3
  %vm720 = vcmp.lt.s32.totalorder %v719, 2
  %vm721 = vcmp.eq.s32.totalorder %v719, 0
  %v722 = vxor.u32 %v717, 2147483648
  %v723 = vsel %vm721, %v709, %v722
  %vm724 = vcmp.eq.s32.totalorder %v719, 2
  %v725 = vxor.u32 %v709, 2147483648
  %v726 = vsel %vm724, %v725, %v717
  %v727 = vsel %vm720, %v723, %v726
  %v728 = vsel %vm718, nan, %v727
  %v729 = vand.u32 2147483647, %v573
  %vm730 = vcmp.le.f32.partialorder %v729, 0.7853982
  %vm731 = vcmp.lt.s32.totalorder %v573, 0
  %v732 = vand.u32 %v573, 2139095040
  %v733 = vshrl.u32 %v732, 23
  %v734 = vsub.s32 %v733, 127
  %v735 = vand.u32 2147483647, %v573
  %v736 = vand.u32 %v735, 8388607
  %v737 = vor.u32 %v736, 8388608
  %v738 = vsub.s32 0, %v737
  %v739 = vadd.s32 %v734, 1
  %vm740 = vcmp.gt.s32.totalorder %v739, 0
  %v741 = vsel %vm740, %v739, 0
  %v742 = vshrl.u32 %v741, 5
  %v743 = vand.u32 %v741, 31
  %v744 = vsub.s32 32, %v743
  %v745 = vshrl.u32 683565275, %v744
  %v746 = vshll.u32 683565275, %v743
  %v747 = vshrl.u32 2475754826, %v744
  %v748 = vor.u32 %v746, %v747
  %v749 = vshll.u32 2475754826, %v743
  %v750 = vshrl.u32 2131351028, %v744
  %v751 = vor.u32 %v749, %v750
  %v752 = vshll.u32 2131351028, %v743
  %v753 = vshrl.u32 2102212464, %v744
  %v754 = vor.u32 %v752, %v753
  %v755 = vshll.u32 2102212464, %v743
  %v756 = vshrl.u32 920167782, %v744
  %v757 = vor.u32 %v755, %v756
  %v758 = vshll.u32 920167782, %v743
  %v759 = vshrl.u32 1326507024, %v744
  %v760 = vor.u32 %v758, %v759
  %vm761 = vcmp.lt.s32.totalorder %v742, 1
  %vm762 = vcmp.lt.s32.totalorder %v742, 2
  %vm763 = vcmp.lt.s32.totalorder %v742, 3
  %vm764 = vcmp.lt.s32.totalorder %v742, 4
  %v765 = vsel %vm761, %v745, %v748
  %v766 = vsel %vm764, %v754, 2102212464
  %v767 = vsel %vm763, %v751, %v766
  %v768 = vsel %vm762, %v765, %v767
  %v769 = vsel %vm761, %v748, %v751
  %v770 = vsel %vm764, %v757, 920167782
  %v771 = vsel %vm763, %v754, %v770
  %v772 = vsel %vm762, %v769, %v771
  %v773 = vsel %vm761, %v751, %v754
  %v774 = vsel %vm764, %v760, 1326507024
  %v775 = vsel %vm763, %v757, %v774
  %v776 = vsel %vm762, %v773, %v775
  %v777 = vshll.u32 %v737, 8
  %v778 = vand.u32 %v777, 65535
  %v779 = vshrl.u32 %v777, 16
  %v780 = vand.u32 %v776, 65535
  %v781 = vshrl.u32 %v776, 16
  %v782 = vmul.u32 %v778, %v780
  %v783 = vmul.u32 %v778, %v781
  %v784 = vmul.u32 %v779, %v780
  %v785 = vmul.u32 %v779, %v781
  %v786 = vshll.u32 %v783, 16
  %v787 = vshrl.u32 %v783, 16
  %v788 = vshll.u32 %v784, 16
  %v789 = vshrl.u32 %v784, 16
  %vm790 = vc.u32 %v782, %v786
  %v791 = vsel %vm790, 1, 0
  %v792 = vadd.s32 %v782, %v786
  %v793 = vadd.s32 %v785, %v791
  %vm794 = vc.u32 %v792, %v788
  %v795 = vsel %vm794, 1, 0
  %v796 = vadd.s32 %v792, %v788
  %v797 = vadd.s32 %v793, %v795
  %v798 = vadd.s32 %v797, %v787
  %v799 = vadd.s32 %v798, %v789
  %v800 = vand.u32 %v777, 65535
  %v801 = vshrl.u32 %v777, 16
  %v802 = vand.u32 %v772, 65535
  %v803 = vshrl.u32 %v772, 16
  %v804 = vmul.u32 %v800, %v802
  %v805 = vmul.u32 %v800, %v803
  %v806 = vmul.u32 %v801, %v802
  %v807 = vmul.u32 %v801, %v803
  %v808 = vshll.u32 %v805, 16
  %v809 = vshrl.u32 %v805, 16
  %v810 = vshll.u32 %v806, 16
  %v811 = vshrl.u32 %v806, 16
  %vm812 = vc.u32 %v804, %v808
  %v813 = vsel %vm812, 1, 0
  %v814 = vadd.s32 %v804, %v808
  %v815 = vadd.s32 %v807, %v813
  %vm816 = vc.u32 %v814, %v810
  %v817 = vsel %vm816, 1, 0
  %v818 = vadd.s32 %v814, %v810
  %v819 = vadd.s32 %v815, %v817
  %v820 = vadd.s32 %v819, %v809
  %v821 = vadd.s32 %v820, %v811
  %v822 = vmul.u32 %v777, %v768
  %v823 = vadd.s32 %v799, %v818
  %vm824 = vc.u32 %v799, %v818
  %v825 = vadd.s32 %v821, 1
  %v826 = vsel %vm824, %v825, %v821
  %v827 = vadd.s32 %v822, %v826
  %v828 = vadd.s32 %v827, 536870912
  %v829 = vshrl.u32 %v828, 30
  %v830 = vshll.u32 %v829, 30
  %v831 = vsub.s32 %v827, %v830
  %vm832 = vcmp.lt.s32.totalorder %v831, 0
  %v833 = vsub.s32 0, %v831
  %v834 = vsel %vm832, %v833, %v831
  %v835 = vclz %v834
  %v836 = vsub.s32 %v835, 2
  %vm837 = vcmp.gt.s32.totalorder 0, %v836
  %v838 = vsel %vm837, 0, %v836
  %v839 = vsub.s32 32, %v838
  %v840 = vshll.u32 %v831, %v838
  %v841 = vshrl.u32 %v823, %v839
  %v842 = vor.u32 %v840, %v841
  %v843 = vsub.s32 4294967266, %v838
  %v844 = vadd.s32 %v843, 127
  %v845 = vshll.u32 %v844, 23
  %v846 = vor.u32 4788187, %v845
  %v847 = vand.u32 2147483647, %v846
  %v849 = vcvt.s32.f32 %v842
  %v850 = vmul.f32 %v849, %v847
  %v851 = vxor.u32 %v850, 2147483648
  %v852 = vsel %vm731, %v851, %v850
  %v853 = vsub.s32 4, %v829
  %v854 = vsel %vm731, %v853, %v829
  %v855 = vsel %vm730, %v573, %v852
  %v856 = vsel %vm730, 0, %v854
  %v857 = vmul.f32 %v855, %v855
  %v858 = vmul.f32 %v857, -0.001358992
  %v859 = vadd.f32 %v858, 0.041655596
  %v860 = vmul.f32 %v857, %v859
  %v861 = vadd.f32 %v860, -0.4999988
  %v862 = vmul.f32 %v857, %v861
  %v863 = vadd.f32 1.0, %v862
  %v864 = vmul.f32 %v855, %v855
  %v865 = vmul.f32 %v864, -0.00019511016
  %v866 = vadd.f32 %v865, 0.008332121
  %v867 = vmul.f32 %v864, %v866
  %v868 = vadd.f32 %v867, -0.16666654
  %v869 = vmul.f32 %v864, %v868
  %v870 = vadd.f32 %v869, 1.0
  %v871 = vmul.f32 %v870, %v855
  %vm872 = vweird.f32 %v573
  %v873 = vadd.s32 %v856, 3
  %v874 = vand.u32 %v873, 3
  %vm875 = vcmp.lt.s32.totalorder %v874, 2
  %vm876 = vcmp.eq.s32.totalorder %v874, 0
  %v877 = vxor.u32 %v871, 2147483648
  %v878 = vsel %vm876, %v863, %v877
  %vm879 = vcmp.eq.s32.totalorder %v874, 2
  %v880 = vxor.u32 %v863, 2147483648
  %v881 = vsel %vm879, %v880, %v871
  %v882 = vsel %vm875, %v878, %v881
  %v883 = vsel %vm872, nan, %v882
  %v884 = vld [vmem:[%s5] sm:$0xf]
  %v885 = vsub.f32 %v883, %v728
  %v886 = vperm.slane %v885, 0
  %888 = vset.pattern.permute.xlu0 0
  %889 = vperm.xlu0 %888, %v884
  %v890 = vpop.permute.xlu0 %889
  %v892 = vmul.f32 %v886, %v890
  %v893 = vperm.slane %v728, 0
  %v894 = vadd.f32 %v893, %v892
  %v895 = vperm.slane %v885, 1
  %896 = vset.pattern.permute.xlu0 1
  %897 = vperm.xlu0 %896, %v884
  %v898 = vpop.permute.xlu0 %897
  %v900 = vmul.f32 %v895, %v898
  %v901 = vperm.slane %v728, 1
  %v902 = vadd.f32 %v901, %v900
  %v903 = vmul.f32 %v894, %v902
  %v904 = vperm.slane %v885, 2
  %v905 = vmul.f32 %v904, %v890
  %v906 = vperm.slane %v728, 2
  %v907 = vadd.f32 %v906, %v905
  %v908 = vperm.slane %v885, 3
  %v909 = vmul.f32 %v908, %v898
  %v910 = vperm.slane %v728, 3
  %v911 = vadd.f32 %v910, %v909
  %v912 = vmul.f32 %v907, %v911
  %v913 = vld [vmem:[%s6] sm:$0xff]
  %v914 = vld [vmem:[%s6 + $0x8] sm:$0xff]
  %vm915 = vcmask 31744
  %v917 = vsel %vm915, %v913, 0
  %v920 = vsel %vm915, %v914, 0
  %vm922 = vcmask 1043456
  %v924 = vsel %vm922, %v903, 0
  %926 = vmatpush.msra.mxu0 0.0
  %927 = vmatpush.msra.mxu0 0.0
  %928 = vmatpush.msra.mxu0 0.0
  %929 = vmatpush.msra.mxu0 0.0
  %930 = vmatpush.msra.mxu0 0.0
  %931 = vmatpush.msra.mxu0 0.0
  %932 = vmatpush.msra.mxu0 0.0
  %933 = vmatpush.msra.mxu0 0.0
  %934 = vmatpush.msra.mxu0 0.0
  %935 = vmatpush.msra.mxu0 0.0
  %936 = vmatpush.msra.mxu0 0.0
  %937 = vmatpush.msra.mxu0 0.0
  %938 = vmatpush.msra.mxu0 0.0
  %939 = vmatpush.msra.mxu0 0.0
  %940 = vmatpush.msra.mxu0 0.0
  %941 = vmatpush.msra.mxu0 %v924
  %942 = vmatmul.f32.gmra.mxu0 %v917
  %v943 = vpop.f32.mrf.mxu0
  %v944 = vadd.f32 0.0, %v943
  %945 = vmatmul.f32.gmra.mxu0 %v920
  %v946 = vpop.f32.mrf.mxu0
  %v947 = vadd.f32 0.0, %v946
  %948 = vdwg.mxu0
  %v949 = vld [vmem:[%s7] sm:$0xff]
  %v950 = vld [vmem:[%s7 + $0x8] sm:$0xff]
  %v952 = vsel %vm915, %v949, 0
  %v955 = vsel %vm915, %v950, 0
  %v958 = vsel %vm922, %v912, 0
  %960 = vmatpush.msra.mxu0 0.0
  %961 = vmatpush.msra.mxu0 0.0
  %962 = vmatpush.msra.mxu0 0.0
  %963 = vmatpush.msra.mxu0 0.0
  %964 = vmatpush.msra.mxu0 0.0
  %965 = vmatpush.msra.mxu0 0.0
  %966 = vmatpush.msra.mxu0 0.0
  %967 = vmatpush.msra.mxu0 0.0
  %968 = vmatpush.msra.mxu0 0.0
  %969 = vmatpush.msra.mxu0 0.0
  %970 = vmatpush.msra.mxu0 0.0
  %971 = vmatpush.msra.mxu0 0.0
  %972 = vmatpush.msra.mxu0 0.0
  %973 = vmatpush.msra.mxu0 0.0
  %974 = vmatpush.msra.mxu0 0.0
  %975 = vmatpush.msra.mxu0 %v958
  %976 = vmatmul.f32.gmra.mxu0 %v952
  %v977 = vpop.f32.mrf.mxu0
  %v978 = vadd.f32 0.0, %v977
  %979 = vmatmul.f32.gmra.mxu0 %v955
  %v980 = vpop.f32.mrf.mxu0
  %v981 = vadd.f32 0.0, %v980
  %982 = vdwg.mxu0
  %v983 = vmul.f32 %v944, %v978
  %v984 = vmul.f32 %v947, %v981
  %v985 = vld [vmem:[%s8] sm:$0xff]
  %v986 = vld [vmem:[%s8 + $0x8] sm:$0xff]
  %vm987 = vcmask 130048
  %v989 = vsel %vm987, %v985, 0
  %v992 = vsel %vm987, %v986, 0
  %994 = vmatpush.msra.mxu0 0.0
  %995 = vmatpush.msra.mxu0 0.0
  %996 = vmatpush.msra.mxu0 0.0
  %997 = vmatpush.msra.mxu0 0.0
  %998 = vmatpush.msra.mxu0 0.0
  %999 = vmatpush.msra.mxu0 0.0
  %1000 = vmatpush.msra.mxu0 0.0
  %1001 = vmatpush.msra.mxu0 0.0
  %1002 = vmatpush.msra.mxu0 0.0
  %1003 = vmatpush.msra.mxu0 0.0
  %1004 = vmatpush.msra.mxu0 0.0
  %1005 = vmatpush.msra.mxu0 0.0
  %1006 = vmatpush.msra.mxu0 0.0
  %1007 = vmatpush.msra.mxu0 0.0
  %1008 = vmatpush.msra.mxu0 %v984
  %1009 = vmatpush.msra.mxu0 %v983
  %1010 = vmatmul.f32.gmra.mxu0 %v989
  %v1011 = vpop.f32.mrf.mxu0
  %v1012 = vadd.f32 0.0, %v1011
  %1013 = vmatmul.f32.gmra.mxu0 %v992
  %v1014 = vpop.f32.mrf.mxu0
  %v1015 = vadd.f32 0.0, %v1014
  %1016 = vdwg.mxu0
  %v1017 = vmul.f32 %v1012, %v1012
  %v1018 = vmul.f32 %v1015, %v1015
  %v1019 = vld [vmem:[%s9] sm:$0xff]
  %v1020 = vld [vmem:[%s9 + $0x8] sm:$0xff]
  %v1021 = vld [vmem:[%s9 + $0x10] sm:$0xff]
  %v1022 = vld [vmem:[%s9 + $0x18] sm:$0xff]
  %v1023 = vld [vmem:[%s9 + $0x20] sm:$0xff]
  %v1024 = vld [vmem:[%s9 + $0x28] sm:$0xff]
  %v1025 = vld [vmem:[%s9 + $0x30] sm:$0xff]
  %v1026 = vld [vmem:[%s9 + $0x38] sm:$0xff]
  %v1027 = vld [vmem:[%s10] sm:$0xff]
  %v1028 = vld [vmem:[%s10 + $0x8] sm:$0xff]
  %v1029 = vld [vmem:[%s10 + $0x10] sm:$0xff]
  %v1030 = vld [vmem:[%s10 + $0x18] sm:$0xff]
  %v1031 = vld [vmem:[%s10 + $0x20] sm:$0xff]
  %v1032 = vld [vmem:[%s10 + $0x28] sm:$0xff]
  %v1033 = vld [vmem:[%s10 + $0x30] sm:$0xff]
  %v1034 = vld [vmem:[%s10 + $0x38] sm:$0xff]
  %1036 = vset.pattern.permute.xlu0 0
  %1037 = vperm.xlu0 %1036, %v1027
  %v1038 = vpop.permute.xlu0 %1037
  %1041 = vset.pattern.permute.xlu0 0
  %1042 = vperm.xlu0 %1041, %v1028
  %v1043 = vpop.permute.xlu0 %1042
  %1046 = vset.pattern.permute.xlu0 0
  %1047 = vperm.xlu0 %1046, %v1029
  %v1048 = vpop.permute.xlu0 %1047
  %1051 = vset.pattern.permute.xlu0 0
  %1052 = vperm.xlu0 %1051, %v1030
  %v1053 = vpop.permute.xlu0 %1052
  %1056 = vset.pattern.permute.xlu0 0
  %1057 = vperm.xlu0 %1056, %v1031
  %v1058 = vpop.permute.xlu0 %1057
  %1061 = vset.pattern.permute.xlu0 0
  %1062 = vperm.xlu0 %1061, %v1032
  %v1063 = vpop.permute.xlu0 %1062
  %1066 = vset.pattern.permute.xlu0 0
  %1067 = vperm.xlu0 %1066, %v1033
  %v1068 = vpop.permute.xlu0 %1067
  %1071 = vset.pattern.permute.xlu0 0
  %1072 = vperm.xlu0 %1071, %v1034
  %v1073 = vpop.permute.xlu0 %1072
  %v1076 = vsel %vm987, %v1019, 0
  %v1079 = vsel %vm987, %v1020, 0
  %v1082 = vsel %vm987, %v1021, 0
  %v1085 = vsel %vm987, %v1022, 0
  %v1088 = vsel %vm987, %v1023, 0
  %v1091 = vsel %vm987, %v1024, 0
  %v1094 = vsel %vm987, %v1025, 0
  %v1097 = vsel %vm987, %v1026, 0
  %1099 = vmatpush.msra.mxu0 0.0
  %1100 = vmatpush.msra.mxu0 0.0
  %1101 = vmatpush.msra.mxu0 0.0
  %1102 = vmatpush.msra.mxu0 0.0
  %1103 = vmatpush.msra.mxu0 0.0
  %1104 = vmatpush.msra.mxu0 0.0
  %1105 = vmatpush.msra.mxu0 0.0
  %1106 = vmatpush.msra.mxu0 0.0
  %1107 = vmatpush.msra.mxu0 0.0
  %1108 = vmatpush.msra.mxu0 0.0
  %1109 = vmatpush.msra.mxu0 0.0
  %1110 = vmatpush.msra.mxu0 0.0
  %1111 = vmatpush.msra.mxu0 0.0
  %1112 = vmatpush.msra.mxu0 0.0
  %1113 = vmatpush.msra.mxu0 %v1018
  %1114 = vmatpush.msra.mxu0 %v1017
  %1115 = vmatmul.f32.gmra.mxu0 %v1076
  %v1116 = vpop.f32.mrf.mxu0
  %v1117 = vadd.f32 %v1038, %v1116
  %1118 = vmatmul.f32.gmra.mxu0 %v1079
  %v1119 = vpop.f32.mrf.mxu0
  %v1120 = vadd.f32 %v1043, %v1119
  %1121 = vmatmul.f32.gmra.mxu0 %v1082
  %v1122 = vpop.f32.mrf.mxu0
  %v1123 = vadd.f32 %v1048, %v1122
  %1124 = vmatmul.f32.gmra.mxu0 %v1085
  %v1125 = vpop.f32.mrf.mxu0
  %v1126 = vadd.f32 %v1053, %v1125
  %1127 = vmatmul.f32.gmra.mxu0 %v1088
  %v1128 = vpop.f32.mrf.mxu0
  %v1129 = vadd.f32 %v1058, %v1128
  %1130 = vmatmul.f32.gmra.mxu0 %v1091
  %v1131 = vpop.f32.mrf.mxu0
  %v1132 = vadd.f32 %v1063, %v1131
  %1133 = vmatmul.f32.gmra.mxu0 %v1094
  %v1134 = vpop.f32.mrf.mxu0
  %v1135 = vadd.f32 %v1068, %v1134
  %1136 = vmatmul.f32.gmra.mxu0 %v1097
  %v1137 = vpop.f32.mrf.mxu0
  %v1138 = vadd.f32 %v1073, %v1137
  %1139 = vdwg.mxu0
  %v1140 = vmax.f32 %v1117, 0.0
  %v1141 = vmax.f32 %v1120, 0.0
  %v1142 = vmax.f32 %v1123, 0.0
  %v1143 = vmax.f32 %v1126, 0.0
  %v1144 = vmax.f32 %v1129, 0.0
  %v1145 = vmax.f32 %v1132, 0.0
  %v1146 = vmax.f32 %v1135, 0.0
  %v1147 = vmax.f32 %v1138, 0.0
  %v1148 = vld [vmem:[%s11] sm:$0xff]
  %v1149 = vld [vmem:[%s11 + $0x8] sm:$0xff]
  %v1150 = vld [vmem:[%s11 + $0x10] sm:$0xff]
  %v1151 = vld [vmem:[%s11 + $0x18] sm:$0xff]
  %v1152 = vld [vmem:[%s12] sm:$0xff]
  %v1153 = vld [vmem:[%s12 + $0x8] sm:$0xff]
  %v1154 = vld [vmem:[%s12 + $0x10] sm:$0xff]
  %v1155 = vld [vmem:[%s12 + $0x18] sm:$0xff]
  %1157 = vset.pattern.permute.xlu0 0
  %1158 = vperm.xlu0 %1157, %v1152
  %v1159 = vpop.permute.xlu0 %1158
  %1162 = vset.pattern.permute.xlu0 0
  %1163 = vperm.xlu0 %1162, %v1153
  %v1164 = vpop.permute.xlu0 %1163
  %1167 = vset.pattern.permute.xlu0 0
  %1168 = vperm.xlu0 %1167, %v1154
  %v1169 = vpop.permute.xlu0 %1168
  %1172 = vset.pattern.permute.xlu0 0
  %1173 = vperm.xlu0 %1172, %v1155
  %v1174 = vpop.permute.xlu0 %1173
  %vm1176 = vcmask 523264
  %v1178 = vsel %vm1176, %v1148, 0
  %v1181 = vsel %vm1176, %v1149, 0
  %v1184 = vsel %vm1176, %v1150, 0
  %v1187 = vsel %vm1176, %v1151, 0
  %1189 = vmatpush.msra.mxu0 0.0
  %1190 = vmatpush.msra.mxu0 0.0
  %1191 = vmatpush.msra.mxu0 0.0
  %1192 = vmatpush.msra.mxu0 0.0
  %1193 = vmatpush.msra.mxu0 0.0
  %1194 = vmatpush.msra.mxu0 0.0
  %1195 = vmatpush.msra.mxu0 0.0
  %1196 = vmatpush.msra.mxu0 0.0
  %1197 = vmatpush.msra.mxu0 %v1147
  %1198 = vmatpush.msra.mxu0 %v1146
  %1199 = vmatpush.msra.mxu0 %v1145
  %1200 = vmatpush.msra.mxu0 %v1144
  %1201 = vmatpush.msra.mxu0 %v1143
  %1202 = vmatpush.msra.mxu0 %v1142
  %1203 = vmatpush.msra.mxu0 %v1141
  %1204 = vmatpush.msra.mxu0 %v1140
  %1205 = vmatmul.f32.gmra.mxu0 %v1178
  %v1206 = vpop.f32.mrf.mxu0
  %v1207 = vadd.f32 %v1159, %v1206
  %1208 = vmatmul.f32.gmra.mxu0 %v1181
  %v1209 = vpop.f32.mrf.mxu0
  %v1210 = vadd.f32 %v1164, %v1209
  %1211 = vmatmul.f32.gmra.mxu0 %v1184
  %v1212 = vpop.f32.mrf.mxu0
  %v1213 = vadd.f32 %v1169, %v1212
  %1214 = vmatmul.f32.gmra.mxu0 %v1187
  %v1215 = vpop.f32.mrf.mxu0
  %v1216 = vadd.f32 %v1174, %v1215
  %1217 = vdwg.mxu0
  %v1218 = vmax.f32 %v1207, 0.0
  %v1219 = vmax.f32 %v1210, 0.0
  %v1220 = vmax.f32 %v1213, 0.0
  %v1221 = vmax.f32 %v1216, 0.0
  %v1222 = vld [vmem:[%s13] sm:$0x1]
  %v1223 = vld [vmem:[#allocation2] sm:$0x1]
  %1225 = vset.pattern.permute.xlu0 0
  %1226 = vperm.xlu0 %1225, %v1223
  %v1227 = vpop.permute.xlu0 %1226
  %v1229 = vperm.slane %v1227, 0
  %v1231 = vsel %vm280, %v1222, 0
  %1233 = vmatpush.msra.mxu0 0.0
  %1234 = vmatpush.msra.mxu0 0.0
  %1235 = vmatpush.msra.mxu0 0.0
  %1236 = vmatpush.msra.mxu0 0.0
  %1237 = vmatpush.msra.mxu0 0.0
  %1238 = vmatpush.msra.mxu0 0.0
  %1239 = vmatpush.msra.mxu0 0.0
  %1240 = vmatpush.msra.mxu0 0.0
  %1241 = vmatpush.msra.mxu0 0.0
  %1242 = vmatpush.msra.mxu0 0.0
  %1243 = vmatpush.msra.mxu0 0.0
  %1244 = vmatpush.msra.mxu0 0.0
  %1245 = vmatpush.msra.mxu0 %v1221
  %1246 = vmatpush.msra.mxu0 %v1220
  %1247 = vmatpush.msra.mxu0 %v1219
  %1248 = vmatpush.msra.mxu0 %v1218
  %1249 = vmatmul.f32.gmra.mxu0 %v1231
  %v1250 = vpop.f32.mrf.mxu0
  %v1251 = vadd.f32 %v1229, %v1250
  %1252 = vdwg.mxu0
  %1253 = vst [vmem:[%s15] sm:$0x1] %v1251
  // Predicated region
  $region62: #{_impl.1} parent=0 // pred_check
    _
  $region63: #{_impl.1} parent=0 // pred_check_branch
    %1255 = sbr.rel (0) target = $region65
  $region64: #{_impl.1} parent=0 // pred_region
    _
  $region65: #{_impl.1} parent=0 // pred_fallthru
    _
  // Predicated region
  $region66: #{_impl.1} parent=0 // pred_check
    _
  $region67: #{_impl.1} parent=0 // pred_check_branch
    %1257 = sbr.rel (0) target = $region69
  $region68: #{_impl.1} parent=0 // pred_region
    _
  $region69: #{_impl.1} parent=0 // pred_fallthru
    _

</llo_original>
